<compile_context>
chip_gen: v5e
topology: v5e:2x2
jax: 0.10.0
libtpu: 0.0.40
codegen_flags: <defaults>
</compile_context>

<pallas_src>
import jax
import jax.numpy as jnp
from jax.experimental import pallas as pl
from jax.experimental.pallas import tpu as pltpu

# Dimensions implied by the module: fc input is 1280 = img_feat + text dims.
IMG_FEAT = 1024      # stand-in CLIP image-embedding width
TXT_FEAT = 256       # text feature width supplied by the caller
HIDDEN = 128
NUM_CLASSES = 2
OUT_PAD = 128        # lane-dense padded output width (first 2 cols are real)

TILE_M_MAX = 512     # batch tile cap (review: 256 left ~35-40% step overhead)


def _round_up(x, m):
    return ((x + m - 1) // m) * m


def _num_tensorcores():
    # v7x has 2 TensorCores per chip; size tiles so the grid can shard across
    # them.  v5e/v6e have a single TC.
    try:
        kind = jax.devices()[0].device_kind.lower()
    except Exception:
        return 1
    return 2 if "v7" in kind else 1


# ----------------------------------------------------------------------------
# Kernels
# ----------------------------------------------------------------------------
def _head(img_feat_bf16, txt_bf16, w1i, w1t, b1, w2, b2):
    """fc head: Linear(1280,128) -> ReLU -> Dropout(0.2, eval) -> Linear(128,2pad)."""
    f32 = jnp.float32
    # fc[0]: concat + matmul == split matmul (exact).  bf16 MXU operands,
    # f32 accumulation; bias add / ReLU stay f32.
    h = (jnp.dot(img_feat_bf16, w1i, preferred_element_type=f32)
         + jnp.dot(txt_bf16, w1t, preferred_element_type=f32)
         + b1)
    # fc[1]: ReLU
    h = jnp.maximum(h, 0.0)
    # fc[2]: Dropout(p=0.2) -- inference identity.
    # TODO(synk): training-mode dropout would use pltpu.prng_seed /
    # pltpu.prng_random_bits for the mask.
    # fc[3]: Linear(128, 2) padded to 128 output lanes (lane-dense store).
    return jnp.dot(h.astype(jnp.bfloat16), w2, preferred_element_type=f32) + b2


def clip_classifier_full_kernel(img_ref, txt_ref, we_ref,
                                w1i_ref, w1t_ref, b1_ref,
                                w2_ref, b2_ref, out_ref):
    """Explicit stand-in encoder matmul + head (unfolded path)."""
    bf16 = jnp.bfloat16
    img = img_ref[...].astype(bf16)
    txt = txt_ref[...].astype(bf16)
    # ---- stand-in for clip_imodel.encode_image(image).float() -------------
    # TODO(synk): real CLIP vision transformer is an external pretrained model;
    # a deterministic linear projection stands in for it here.
    img_feat = jnp.dot(img, we_ref[...], preferred_element_type=jnp.float32)
    out = _head(img_feat.astype(bf16), txt,
                w1i_ref[...], w1t_ref[...], b1_ref[...], w2_ref[...], b2_ref[...])
    out_ref[...] = out.astype(out_ref.dtype)


def clip_classifier_folded_kernel(img_ref, txt_ref, w1f_ref,
                                  w1t_ref, b1_ref, w2_ref, b2_ref, out_ref):
    """Encoder folded into fc[0]: img @ (we @ w1i) -- valid only for the
    linear stand-in encoder."""
    bf16 = jnp.bfloat16
    out = _head(img_ref[...].astype(bf16), txt_ref[...].astype(bf16),
                w1f_ref[...], w1t_ref[...], b1_ref[...], w2_ref[...], b2_ref[...])
    out_ref[...] = out.astype(out_ref.dtype)


# ----------------------------------------------------------------------------
# Wrapper
# ----------------------------------------------------------------------------
def clip_classifier_forward(image_nchw, text, params, *, tile_m=None,
                            fold_encoder=True):
    """image_nchw: (B, C, H, W); text: (B, TXT_FEAT). Returns (B, NUM_CLASSES) f32."""
    B = image_nchw.shape[0]
    img = image_nchw.reshape(B, -1)
    assert img.shape[1] == IMG_FEAT, "flattened image must be 1024-dim"
    assert text.shape == (B, TXT_FEAT)

    # Stream activations as bf16 (keeps the kernel MXU-bound).  No batch
    # padding pass: the grid uses a partial last block and the wrapper slices
    # [:B].  Callers that already hold bf16 activations skip the cast entirely.
    if img.dtype != jnp.bfloat16:
        img = img.astype(jnp.bfloat16)
    if text.dtype != jnp.bfloat16:
        text = text.astype(jnp.bfloat16)

    if tile_m is None:
        # Target at least one tile per TensorCore (2 on v7x) and cap at
        # TILE_M_MAX; round to a sublane-aligned size so small batches don't
        # blow up to a 512-row tile.
        per_core = pl.cdiv(B, _num_tensorcores())
        tile_m = min(TILE_M_MAX, max(16, _round_up(per_core, 16)))
    grid = (pl.cdiv(B, tile_m),)

    resident = lambda arr: pl.BlockSpec(arr.shape, lambda i: (0,) * arr.ndim)
    batched = lambda feat: pl.BlockSpec((tile_m, feat), lambda i: (i, 0))

    if fold_encoder:
        # TODO(synk): folding is only valid while the stand-in encoder is a
        # pure linear map; a real CLIP vision tower cannot be folded into fc[0].
        w1f = params.get("w1_folded")
        if w1f is None:
            w1f = jnp.dot(params["we"].astype(jnp.float32),
                          params["w1i"].astype(jnp.float32)).astype(jnp.bfloat16)
        weights = (w1f, params["w1t"], params["b1"], params["w2"], params["b2"])
        kernel = clip_classifier_folded_kernel
    else:
        weights = (params["we"], params["w1i"], params["w1t"], params["b1"],
                   params["w2"], params["b2"])
        kernel = clip_classifier_full_kernel

    out = pl.pallas_call(
        kernel,
        out_shape=jax.ShapeDtypeStruct((B, OUT_PAD), jnp.bfloat16),
        grid=grid,
        in_specs=[batched(IMG_FEAT),              # image tile (pipelined)
                  batched(TXT_FEAT)]              # text tile
                 + [resident(w) for w in weights],  # weights VMEM-resident
        out_specs=batched(OUT_PAD),               # lane-dense (tile_m, 128) block
        compiler_params=pltpu.CompilerParams(
            dimension_semantics=("parallel",),    # megacore-shardable batch axis
            vmem_limit_bytes=32 * 1024 * 1024,    # ~11 MiB worst case at tile_m=512
        ),
    )(img, text, *weights)

    return out[:B, :NUM_CLASSES].astype(jnp.float32)


# ----------------------------------------------------------------------------
# Parameters & pure-JAX reference
# ----------------------------------------------------------------------------
def init_params(key):
    ks = jax.random.split(key, 6)
    scale = lambda fan_in: 1.0 / jnp.sqrt(fan_in)
    bf16 = jnp.bfloat16

    # Stand-in encoder projection (bf16-streamed, f32-accumulated on the MXU).
    we = (jax.random.normal(ks[0], (IMG_FEAT, IMG_FEAT), jnp.float32)
          * scale(IMG_FEAT)).astype(bf16)
    # fc[0] weight (out=128, in=1280) stored transposed and split along the
    # 1280-input axis into the image part (first 1024) and text part (last 256).
    w1i = (jax.random.normal(ks[1], (IMG_FEAT, HIDDEN), jnp.float32)
           * scale(IMG_FEAT + TXT_FEAT)).astype(bf16)
    w1t = (jax.random.normal(ks[2], (TXT_FEAT, HIDDEN), jnp.float32)
           * scale(IMG_FEAT + TXT_FEAT)).astype(bf16)
    b1 = jax.random.normal(ks[3], (1, HIDDEN), jnp.float32) * 0.01
    # fc[3] weight/bias padded to a lane-dense 128-wide output; padding is zero.
    w2_core = (jax.random.normal(ks[4], (HIDDEN, NUM_CLASSES), jnp.float32)
               * scale(HIDDEN))
    w2 = jnp.zeros((HIDDEN, OUT_PAD), jnp.float32).at[:, :NUM_CLASSES].set(w2_core)
    w2 = w2.astype(bf16)
    b2_core = jax.random.normal(ks[5], (1, NUM_CLASSES), jnp.float32) * 0.01
    b2 = jnp.zeros((1, OUT_PAD), jnp.float32).at[:, :NUM_CLASSES].set(b2_core)
    # Offline fold of the (linear) stand-in encoder into fc[0]'s image half.
    w1_folded = jnp.dot(we.astype(jnp.float32),
                        w1i.astype(jnp.float32)).astype(bf16)
    return {"we": we, "w1i": w1i, "w1t": w1t, "b1": b1, "w2": w2, "b2": b2,
            "w1_folded": w1_folded}


def reference_forward(image_nchw, text, params, *, fold_encoder=True):
    """Pure-JAX reference mirroring the PyTorch forward (eval mode) with the
    same bf16-operand / f32-accumulation / bf16-output numerics as the kernel."""
    B = image_nchw.shape[0]
    bf16, f32 = jnp.bfloat16, jnp.float32
    img = image_nchw.reshape(B, -1).astype(bf16)
    txt = text.astype(bf16)
    if fold_encoder:
        feat, w1i_eff = img, params["w1_folded"]
    else:
        feat = jnp.dot(img, params["we"], preferred_element_type=f32).astype(bf16)
        w1i_eff = params["w1i"]
    h = (jnp.dot(feat, w1i_eff, preferred_element_type=f32)
         + jnp.dot(txt, params["w1t"], preferred_element_type=f32)
         + params["b1"])
    h = jnp.maximum(h, 0.0)
    out = (jnp.dot(h.astype(bf16), params["w2"], preferred_element_type=f32)
           + params["b2"])
    return out[:, :NUM_CLASSES].astype(bf16).astype(f32)


if __name__ == "__main__":
    key = jax.random.PRNGKey(0)
    k_img, k_txt, k_par = jax.random.split(key, 3)

    # Small shapes consistent with the forward: image NCHW (2,4,16,16) flattens
    # to 1024 features; text features are (2, 256) -> concat gives 1280.
    image = jax.random.normal(k_img, (2, 4, 16, 16), jnp.float32)
    text = jax.random.normal(k_txt, (2, TXT_FEAT), jnp.float32)
    params = init_params(k_par)

    # Folded path (default, encoder algebraically folded into fc[0]).
    out_fold = jax.block_until_ready(
        clip_classifier_forward(image, text, params, fold_encoder=True))
    ref_fold = reference_forward(image, text, params, fold_encoder=True)
    assert out_fold.shape == (2, NUM_CLASSES)
    assert jnp.allclose(out_fold, ref_fold, atol=3e-2, rtol=3e-2), \
        "folded kernel mismatch vs reference"

    # Unfolded path (explicit stand-in encoder matmul, as a real tower needs).
    out_full = jax.block_until_ready(
        clip_classifier_forward(image, text, params, fold_encoder=False))
    ref_full = reference_forward(image, text, params, fold_encoder=False)
    assert out_full.shape == (2, NUM_CLASSES)
    assert jnp.allclose(out_full, ref_full, atol=3e-2, rtol=3e-2), \
        "unfolded kernel mismatch vs reference"

    print("KERNEL_OK")
</pallas_src>

<mosaic_0001>
module attributes {stable_mosaic.version = 11 : i64} {
  func.func @clip_classifier_folded_kernel(%arg0: i32, %arg1: memref<16x1024xbf16, #tpu.memory_space<vmem>>, %arg2: memref<16x256xbf16, #tpu.memory_space<vmem>>, %arg3: memref<1024x128xbf16, #tpu.memory_space<vmem>>, %arg4: memref<256x128xbf16, #tpu.memory_space<vmem>>, %arg5: memref<1x128xf32, #tpu.memory_space<vmem>>, %arg6: memref<128x128xbf16, #tpu.memory_space<vmem>>, %arg7: memref<1x128xf32, #tpu.memory_space<vmem>>, %arg8: memref<16x128xbf16, #tpu.memory_space<vmem>>) attributes {dimension_semantics = [#tpu.dimension_semantics<parallel>], iteration_bounds = array<i64: 1>, scalar_prefetch = 0 : i64, scratch_operands = 0 : i64, tpu.core_type = #tpu.core_type<tc>, window_params = [{transform_indices = @transform_0, window_bounds = array<i64: 16, 1024>}, {transform_indices = @transform_1, window_bounds = array<i64: 16, 256>}, {pipeline_mode = #tpu.pipeline_mode<synchronous>, transform_indices = @transform_2, window_bounds = array<i64: 1024, 128>}, {pipeline_mode = #tpu.pipeline_mode<synchronous>, transform_indices = @transform_3, window_bounds = array<i64: 256, 128>}, {pipeline_mode = #tpu.pipeline_mode<synchronous>, transform_indices = @transform_4, window_bounds = array<i64: 1, 128>}, {pipeline_mode = #tpu.pipeline_mode<synchronous>, transform_indices = @transform_5, window_bounds = array<i64: 128, 128>}, {pipeline_mode = #tpu.pipeline_mode<synchronous>, transform_indices = @transform_6, window_bounds = array<i64: 1, 128>}, {transform_indices = @transform_7, window_bounds = array<i64: 16, 128>}]} {
    %c0 = arith.constant 0 : index
    %c0_0 = arith.constant 0 : index
    %0 = vector.load %arg1[%c0, %c0_0] : memref<16x1024xbf16, #tpu.memory_space<vmem>>, vector<16x1024xbf16>
    %c0_1 = arith.constant 0 : index
    %c0_2 = arith.constant 0 : index
    %1 = vector.load %arg2[%c0_1, %c0_2] : memref<16x256xbf16, #tpu.memory_space<vmem>>, vector<16x256xbf16>
    %c0_3 = arith.constant 0 : index
    %c0_4 = arith.constant 0 : index
    %2 = vector.load %arg3[%c0_3, %c0_4] : memref<1024x128xbf16, #tpu.memory_space<vmem>>, vector<1024x128xbf16>
    %c0_5 = arith.constant 0 : index
    %c0_6 = arith.constant 0 : index
    %3 = vector.load %arg4[%c0_5, %c0_6] : memref<256x128xbf16, #tpu.memory_space<vmem>>, vector<256x128xbf16>
    %c0_7 = arith.constant 0 : index
    %c0_8 = arith.constant 0 : index
    %4 = vector.load %arg5[%c0_7, %c0_8] : memref<1x128xf32, #tpu.memory_space<vmem>>, vector<1x128xf32>
    %c0_9 = arith.constant 0 : index
    %c0_10 = arith.constant 0 : index
    %5 = vector.load %arg6[%c0_9, %c0_10] : memref<128x128xbf16, #tpu.memory_space<vmem>>, vector<128x128xbf16>
    %c0_11 = arith.constant 0 : index
    %c0_12 = arith.constant 0 : index
    %6 = vector.load %arg7[%c0_11, %c0_12] : memref<1x128xf32, #tpu.memory_space<vmem>>, vector<1x128xf32>
    %cst = arith.constant dense<0.000000e+00> : vector<16x128xf32>
    %7 = tpu.matmul %0, %2, %cst {dimension_numbers = #tpu.dot_dimension_numbers<[1], [0], [0], [1], [0, 0, 1, 1], [], []>} : vector<16x1024xbf16>, vector<1024x128xbf16>, vector<16x128xf32> -> vector<16x128xf32>
    %cst_13 = arith.constant dense<0.000000e+00> : vector<16x128xf32>
    %8 = tpu.matmul %1, %3, %cst_13 {dimension_numbers = #tpu.dot_dimension_numbers<[1], [0], [0], [1], [0, 0, 1, 1], [], []>} : vector<16x256xbf16>, vector<256x128xbf16>, vector<16x128xf32> -> vector<16x128xf32>
    %9 = arith.addf %7, %8 : vector<16x128xf32>
    %10 = vector.broadcast %4 : vector<1x128xf32> to vector<16x128xf32>
    %11 = arith.addf %9, %10 : vector<16x128xf32>
    %cst_14 = arith.constant 0.000000e+00 : f32
    %12 = vector.broadcast %cst_14 : f32 to vector<16x128xf32>
    %13 = arith.maximumf %11, %12 : vector<16x128xf32>
    %14 = arith.truncf %13 : vector<16x128xf32> to vector<16x128xbf16>
    %cst_15 = arith.constant dense<0.000000e+00> : vector<16x128xf32>
    %15 = tpu.matmul %14, %5, %cst_15 {dimension_numbers = #tpu.dot_dimension_numbers<[1], [0], [0], [1], [0, 0, 1, 1], [], []>} : vector<16x128xbf16>, vector<128x128xbf16>, vector<16x128xf32> -> vector<16x128xf32>
    %16 = vector.broadcast %6 : vector<1x128xf32> to vector<16x128xf32>
    %17 = arith.addf %15, %16 : vector<16x128xf32>
    %18 = arith.truncf %17 : vector<16x128xf32> to vector<16x128xbf16>
    %c0_16 = arith.constant 0 : index
    %c0_17 = arith.constant 0 : index
    %19 = vector.load %arg8[%c0_16, %c0_17] : memref<16x128xbf16, #tpu.memory_space<vmem>>, vector<16x128xbf16>
    tpu.vector_store %arg8[%c0_16, %c0_17], %18 {strides = array<i32>} : memref<16x128xbf16, #tpu.memory_space<vmem>>, vector<16x128xbf16>,
    return
  }
  func.func @transform_0(%arg0: i32) -> (i32, i32) {
    %c0_i32 = arith.constant 0 : i32
    %c0_i32_0 = arith.constant 0 : i32
    return %arg0, %c0_i32 : i32, i32
  }
  func.func @transform_1(%arg0: i32) -> (i32, i32) {
    %c0_i32 = arith.constant 0 : i32
    %c0_i32_0 = arith.constant 0 : i32
    return %arg0, %c0_i32 : i32, i32
  }
  func.func @transform_2(%arg0: i32) -> (i32, i32) {
    %c0_i32 = arith.constant 0 : i32
    %c0_i32_0 = arith.constant 0 : i32
    %c0_i32_1 = arith.constant 0 : i32
    return %c0_i32, %c0_i32_0 : i32, i32
  }
  func.func @transform_3(%arg0: i32) -> (i32, i32) {
    %c0_i32 = arith.constant 0 : i32
    %c0_i32_0 = arith.constant 0 : i32
    %c0_i32_1 = arith.constant 0 : i32
    return %c0_i32, %c0_i32_0 : i32, i32
  }
  func.func @transform_4(%arg0: i32) -> (i32, i32) {
    %c0_i32 = arith.constant 0 : i32
    %c0_i32_0 = arith.constant 0 : i32
    %c0_i32_1 = arith.constant 0 : i32
    return %c0_i32, %c0_i32_0 : i32, i32
  }
  func.func @transform_5(%arg0: i32) -> (i32, i32) {
    %c0_i32 = arith.constant 0 : i32
    %c0_i32_0 = arith.constant 0 : i32
    %c0_i32_1 = arith.constant 0 : i32
    return %c0_i32, %c0_i32_0 : i32, i32
  }
  func.func @transform_6(%arg0: i32) -> (i32, i32) {
    %c0_i32 = arith.constant 0 : i32
    %c0_i32_0 = arith.constant 0 : i32
    %c0_i32_1 = arith.constant 0 : i32
    return %c0_i32, %c0_i32_0 : i32, i32
  }
  func.func @transform_7(%arg0: i32) -> (i32, i32) {
    %c0_i32 = arith.constant 0 : i32
    %c0_i32_0 = arith.constant 0 : i32
    return %arg0, %c0_i32 : i32, i32
  }
}

</mosaic_0001>

<llo_original>
// kernel: tpu_custom_call.1
$region0: #{tpu_custom_call.1}
  #allocation0 [shape = 'u32[]', space=smem, size = 0x4, offset = 0x4, fixed_abs, tag = 'smem constant byte address 0x4 - core index']
  #allocation1 [shape = 'u32[72,128]{1,0:T(1,128)}', space=vmem, size = 0x9000, scoped, tag = 'internal scratch']
  %s0 = inlined_call_operand.hbm [shape: bf16[2,1024], index: 0, kind: input, shape index: {}]
  %s1 = inlined_call_operand.hbm [shape: bf16[2,256], index: 1, kind: input, shape index: {}]
  %s2 = inlined_call_operand.hbm [shape: bf16[1024,128], index: 2, kind: input, shape index: {}]
  %s3 = inlined_call_operand.hbm [shape: bf16[256,128], index: 3, kind: input, shape index: {}]
  %s4 = inlined_call_operand.vmem [shape: f32[1,128], index: 4, kind: input, shape index: {}]
  %s5 = inlined_call_operand.hbm [shape: bf16[128,128], index: 5, kind: input, shape index: {}]
  %s6 = inlined_call_operand.vmem [shape: f32[1,128], index: 6, kind: input, shape index: {}]
  %s7 = inlined_call_operand.hbm [shape: bf16[2,128], index: 7, kind: output, shape index: {}]
  %s8 = sld [smem:[#allocation0]]
  $region58: #{tpu_custom_call.1} parent=0
    _
  %s10 = ssub.s32 1, %s8
  %s11 = scalar_select 0, %s10, %s8
  $region1: #{tpu_custom_call.1} parent=0
    #allocation2 [shape = 'u8[32768]{0}', space=vmem, size = 0x8000, scoped, tag = 'input window, operand 0, single buffered']
    #allocation3 [shape = 's32[1]{0}', space=sflag, size = 0x4, scoped, tag = 'scoped memory for tpu_custom_call.1']
    #allocation4 [shape = 's32[1]{0}', space=sflag, size = 0x4, scoped, tag = 'scoped memory for tpu_custom_call.1']
    #allocation5 [shape = 'u8[8192]{0}', space=vmem, size = 0x2000, scoped, tag = 'input window, operand 1, single buffered']
    #allocation6 [shape = 's32[1]{0}', space=sflag, size = 0x4, scoped, tag = 'scoped memory for tpu_custom_call.1']
    #allocation7 [shape = 'u8[262144]{0}', space=vmem, size = 0x40000, scoped, tag = 'input window, operand 2, single buffered']
    #allocation8 [shape = 'u8[65536]{0}', space=vmem, size = 0x10000, scoped, tag = 'input window, operand 3, single buffered']
    #allocation9 [shape = 's32[1]{0}', space=sflag, size = 0x4, scoped, tag = 'scoped memory for tpu_custom_call.1']
    #allocation10 [shape = 'u8[32768]{0}', space=vmem, size = 0x8000, scoped, tag = 'input window, operand 5, single buffered']
    #allocation11 [shape = 'u8[4096]{0}', space=vmem, size = 0x1000, scoped, tag = 'output window, operand 0, single buffered']
    %12 = vsyncpa [#allocation3], 0
    %13 = vsyncpa [#allocation6], 0
    %14 = vsyncpa [#allocation9], 0
    %15 = vsyncpa [#allocation4], 0
    // Predicated region
    $region2: #{tpu_custom_call.1} parent=1 // pred_check
      _
    $region3: #{tpu_custom_call.1} parent=1 // pred_check_branch
      %17 = sbr.rel (0) target = $region5
    $region4: #{tpu_custom_call.1} parent=1 // pred_region
      %19 = vsyncadd [#allocation3], 896
      %s20 = sshll.u32 %s0, 4
      %s21 = int_to_ptr.hbm [resolvable:$true] %s20
      %s22 = sshll.u32 [#allocation2], 4
      %s23 = int_to_ptr.vmem [resolvable:$true] %s22
      %28 = dma.hbm_to_vmem [thread:$0]  %s21, 128, %s23, [#allocation3], 128, 128, 8
    $region5: #{tpu_custom_call.1} parent=1 // pred_fallthru
      _
    // Predicated region
    $region6: #{tpu_custom_call.1} parent=1 // pred_check
      _
    $region7: #{tpu_custom_call.1} parent=1 // pred_check_branch
      %30 = sbr.rel (0) target = $region9
    $region8: #{tpu_custom_call.1} parent=1 // pred_region
      %32 = vsyncadd [#allocation6], 224
      %s33 = sshll.u32 %s1, 4
      %s34 = int_to_ptr.hbm [resolvable:$true] %s33
      %s35 = sshll.u32 [#allocation5], 4
      %s36 = int_to_ptr.vmem [resolvable:$true] %s35
      %41 = dma.hbm_to_vmem [thread:$0]  %s34, 32, %s36, [#allocation6], 32, 32, 2
    $region9: #{tpu_custom_call.1} parent=1 // pred_fallthru
      _
    // Predicated region
    $region10: #{tpu_custom_call.1} parent=1 // pred_check
      _
    $region11: #{tpu_custom_call.1} parent=1 // pred_check_branch
      %43 = sbr.rel (0) target = $region13
    $region12: #{tpu_custom_call.1} parent=1 // pred_region
      %45 = vsyncadd [#allocation6], 0
      %s46 = sshll.u32 %s2, 4
      %s47 = int_to_ptr.hbm [resolvable:$true] %s46
      %s48 = sshll.u32 [#allocation7], 4
      %s49 = int_to_ptr.vmem [resolvable:$true] %s48
      %54 = dma.hbm_to_vmem [thread:$0]  %s47, 8192, %s49, [#allocation6], 64, 64, 4
    $region13: #{tpu_custom_call.1} parent=1 // pred_fallthru
      _
    // Predicated region
    $region14: #{tpu_custom_call.1} parent=1 // pred_check
      _
    $region15: #{tpu_custom_call.1} parent=1 // pred_check_branch
      %56 = sbr.rel (0) target = $region17
    $region16: #{tpu_custom_call.1} parent=1 // pred_region
      %58 = vsyncadd [#allocation9], 0
      %s59 = sshll.u32 %s3, 4
      %s60 = int_to_ptr.hbm [resolvable:$true] %s59
      %s61 = sshll.u32 [#allocation8], 4
      %s62 = int_to_ptr.vmem [resolvable:$true] %s61
      %67 = dma.hbm_to_vmem [thread:$0]  %s60, 2048, %s62, [#allocation9], 64, 64, 4
    $region17: #{tpu_custom_call.1} parent=1 // pred_fallthru
      _
    // Predicated region
    $region18: #{tpu_custom_call.1} parent=1 // pred_check
      _
    $region19: #{tpu_custom_call.1} parent=1 // pred_check_branch
      %69 = sbr.rel (0) target = $region21
    $region20: #{tpu_custom_call.1} parent=1 // pred_region
      _
    $region21: #{tpu_custom_call.1} parent=1 // pred_fallthru
      _
    // Predicated region
    $region22: #{tpu_custom_call.1} parent=1 // pred_check
      _
    $region23: #{tpu_custom_call.1} parent=1 // pred_check_branch
      %71 = sbr.rel (0) target = $region25
    $region24: #{tpu_custom_call.1} parent=1 // pred_region
      %73 = vsyncadd [#allocation9], 0
      %s74 = sshll.u32 %s5, 4
      %s75 = int_to_ptr.hbm [resolvable:$true] %s74
      %s76 = sshll.u32 [#allocation10], 4
      %s77 = int_to_ptr.vmem [resolvable:$true] %s76
      %82 = dma.hbm_to_vmem [thread:$0]  %s75, 1024, %s77, [#allocation9], 64, 64, 4
    $region25: #{tpu_custom_call.1} parent=1 // pred_fallthru
      _
    // Predicated region
    $region26: #{tpu_custom_call.1} parent=1 // pred_check
      _
    $region27: #{tpu_custom_call.1} parent=1 // pred_check_branch
      %84 = sbr.rel (0) target = $region29
    $region28: #{tpu_custom_call.1} parent=1 // pred_region
      _
    $region29: #{tpu_custom_call.1} parent=1 // pred_fallthru
      _
    // Predicated region
    $region30: #{tpu_custom_call.1} parent=1 // pred_check
      _
    $region31: #{tpu_custom_call.1} parent=1 // pred_check_branch
      %86 = sbr.rel (0) target = $region33
    $region32: #{tpu_custom_call.1} parent=1 // pred_region
      %88 = dma.done [#allocation3], 1024
    $region33: #{tpu_custom_call.1} parent=1 // pred_fallthru
      _
    // Predicated region
    $region34: #{tpu_custom_call.1} parent=1 // pred_check
      _
    $region35: #{tpu_custom_call.1} parent=1 // pred_check_branch
      %90 = sbr.rel (0) target = $region37
    $region36: #{tpu_custom_call.1} parent=1 // pred_region
      %92 = dma.done [#allocation6], 256
    $region37: #{tpu_custom_call.1} parent=1 // pred_fallthru
      _
    // Predicated region
    $region38: #{tpu_custom_call.1} parent=1 // pred_check
      _
    $region39: #{tpu_custom_call.1} parent=1 // pred_check_branch
      %94 = sbr.rel (0) target = $region41
    $region40: #{tpu_custom_call.1} parent=1 // pred_region
      %96 = dma.done [#allocation6], 8192
    $region41: #{tpu_custom_call.1} parent=1 // pred_fallthru
      _
    // Predicated region
    $region42: #{tpu_custom_call.1} parent=1 // pred_check
      _
    $region43: #{tpu_custom_call.1} parent=1 // pred_check_branch
      %98 = sbr.rel (0) target = $region45
    $region44: #{tpu_custom_call.1} parent=1 // pred_region
      %100 = dma.done [#allocation9], 2048
    $region45: #{tpu_custom_call.1} parent=1 // pred_fallthru
      _
    // Predicated region
    $region46: #{tpu_custom_call.1} parent=1 // pred_check
      _
    $region47: #{tpu_custom_call.1} parent=1 // pred_check_branch
      %102 = sbr.rel (0) target = $region49
    $region48: #{tpu_custom_call.1} parent=1 // pred_region
      %104 = dma.done [#allocation9], 1024
    $region49: #{tpu_custom_call.1} parent=1 // pred_fallthru
      _
    %v105 = vld [vmem:[#allocation2] sm:$0xff]
    %v106 = vld [vmem:[#allocation2 + $0x8] sm:$0xff]
    %v107 = vld [vmem:[#allocation2 + $0x10] sm:$0xff]
    %v108 = vld [vmem:[#allocation2 + $0x18] sm:$0xff]
    %v109 = vld [vmem:[#allocation2 + $0x20] sm:$0xff]
    %v110 = vld [vmem:[#allocation2 + $0x28] sm:$0xff]
    %v111 = vld [vmem:[#allocation2 + $0x30] sm:$0xff]
    %v112 = vld [vmem:[#allocation2 + $0x38] sm:$0xff]
    %v113 = vld [vmem:[#allocation5] sm:$0x3]
    %v114 = vld [vmem:[#allocation5 + $0x2] sm:$0x3]
    %v115 = vld [vmem:[#allocation5 + $0x4] sm:$0x3]
    %v116 = vld [vmem:[#allocation5 + $0x6] sm:$0x3]
    %v117 = vld [vmem:[#allocation5 + $0x8] sm:$0x3]
    %v118 = vld [vmem:[#allocation5 + $0xa] sm:$0x3]
    %v119 = vld [vmem:[#allocation5 + $0xc] sm:$0x3]
    %v120 = vld [vmem:[#allocation5 + $0xe] sm:$0x3]
    %v121 = vld [vmem:[#allocation7] sm:$0xf]
    %v122 = vld [vmem:[#allocation7 + $0x4] sm:$0xf]
    %v123 = vld [vmem:[#allocation7 + $0x8] sm:$0xf]
    %v124 = vld [vmem:[#allocation7 + $0xc] sm:$0xf]
    %v125 = vld [vmem:[#allocation7 + $0x10] sm:$0xf]
    %v126 = vld [vmem:[#allocation7 + $0x14] sm:$0xf]
    %v127 = vld [vmem:[#allocation7 + $0x18] sm:$0xf]
    %v128 = vld [vmem:[#allocation7 + $0x1c] sm:$0xf]
    %v129 = vld [vmem:[#allocation7 + $0x20] sm:$0xf]
    %v130 = vld [vmem:[#allocation7 + $0x24] sm:$0xf]
    %v131 = vld [vmem:[#allocation7 + $0x28] sm:$0xf]
    %v132 = vld [vmem:[#allocation7 + $0x2c] sm:$0xf]
    %v133 = vld [vmem:[#allocation7 + $0x30] sm:$0xf]
    %v134 = vld [vmem:[#allocation7 + $0x34] sm:$0xf]
    %v135 = vld [vmem:[#allocation7 + $0x38] sm:$0xf]
    %v136 = vld [vmem:[#allocation7 + $0x3c] sm:$0xf]
    %v137 = vld [vmem:[#allocation7 + $0x40] sm:$0xf]
    %v138 = vld [vmem:[#allocation7 + $0x44] sm:$0xf]
    %v139 = vld [vmem:[#allocation7 + $0x48] sm:$0xf]
    %v140 = vld [vmem:[#allocation7 + $0x4c] sm:$0xf]
    %v141 = vld [vmem:[#allocation7 + $0x50] sm:$0xf]
    %v142 = vld [vmem:[#allocation7 + $0x54] sm:$0xf]
    %v143 = vld [vmem:[#allocation7 + $0x58] sm:$0xf]
    %v144 = vld [vmem:[#allocation7 + $0x5c] sm:$0xf]
    %v145 = vld [vmem:[#allocation7 + $0x60] sm:$0xf]
    %v146 = vld [vmem:[#allocation7 + $0x64] sm:$0xf]
    %v147 = vld [vmem:[#allocation7 + $0x68] sm:$0xf]
    %v148 = vld [vmem:[#allocation7 + $0x6c] sm:$0xf]
    %v149 = vld [vmem:[#allocation7 + $0x70] sm:$0xf]
    %v150 = vld [vmem:[#allocation7 + $0x74] sm:$0xf]
    %v151 = vld [vmem:[#allocation7 + $0x78] sm:$0xf]
    %v152 = vld [vmem:[#allocation7 + $0x7c] sm:$0xf]
    %v153 = vld [vmem:[#allocation7 + $0x80] sm:$0xf]
    %v154 = vld [vmem:[#allocation7 + $0x84] sm:$0xf]
    %v155 = vld [vmem:[#allocation7 + $0x88] sm:$0xf]
    %v156 = vld [vmem:[#allocation7 + $0x8c] sm:$0xf]
    %v157 = vld [vmem:[#allocation7 + $0x90] sm:$0xf]
    %v158 = vld [vmem:[#allocation7 + $0x94] sm:$0xf]
    %v159 = vld [vmem:[#allocation7 + $0x98] sm:$0xf]
    %v160 = vld [vmem:[#allocation7 + $0x9c] sm:$0xf]
    %v161 = vld [vmem:[#allocation7 + $0xa0] sm:$0xf]
    %v162 = vld [vmem:[#allocation7 + $0xa4] sm:$0xf]
    %v163 = vld [vmem:[#allocation7 + $0xa8] sm:$0xf]
    %v164 = vld [vmem:[#allocation7 + $0xac] sm:$0xf]
    %v165 = vld [vmem:[#allocation7 + $0xb0] sm:$0xf]
    %v166 = vld [vmem:[#allocation7 + $0xb4] sm:$0xf]
    %v167 = vld [vmem:[#allocation7 + $0xb8] sm:$0xf]
    %v168 = vld [vmem:[#allocation7 + $0xbc] sm:$0xf]
    %v169 = vld [vmem:[#allocation7 + $0xc0] sm:$0xf]
    %v170 = vld [vmem:[#allocation7 + $0xc4] sm:$0xf]
    %v171 = vld [vmem:[#allocation7 + $0xc8] sm:$0xf]
    %v172 = vld [vmem:[#allocation7 + $0xcc] sm:$0xf]
    %v173 = vld [vmem:[#allocation7 + $0xd0] sm:$0xf]
    %v174 = vld [vmem:[#allocation7 + $0xd4] sm:$0xf]
    %v175 = vld [vmem:[#allocation7 + $0xd8] sm:$0xf]
    %v176 = vld [vmem:[#allocation7 + $0xdc] sm:$0xf]
    %v177 = vld [vmem:[#allocation7 + $0xe0] sm:$0xf]
    %v178 = vld [vmem:[#allocation7 + $0xe4] sm:$0xf]
    %v179 = vld [vmem:[#allocation7 + $0xe8] sm:$0xf]
    %v180 = vld [vmem:[#allocation7 + $0xec] sm:$0xf]
    %v181 = vld [vmem:[#allocation7 + $0xf0] sm:$0xf]
    %v182 = vld [vmem:[#allocation7 + $0xf4] sm:$0xf]
    %v183 = vld [vmem:[#allocation7 + $0xf8] sm:$0xf]
    %v184 = vld [vmem:[#allocation7 + $0xfc] sm:$0xf]
    %v185 = vld [vmem:[#allocation7 + $0x100] sm:$0xf]
    %v186 = vld [vmem:[#allocation7 + $0x104] sm:$0xf]
    %v187 = vld [vmem:[#allocation7 + $0x108] sm:$0xf]
    %v188 = vld [vmem:[#allocation7 + $0x10c] sm:$0xf]
    %v189 = vld [vmem:[#allocation7 + $0x110] sm:$0xf]
    %v190 = vld [vmem:[#allocation7 + $0x114] sm:$0xf]
    %v191 = vld [vmem:[#allocation7 + $0x118] sm:$0xf]
    %v192 = vld [vmem:[#allocation7 + $0x11c] sm:$0xf]
    %v193 = vld [vmem:[#allocation7 + $0x120] sm:$0xf]
    %v194 = vld [vmem:[#allocation7 + $0x124] sm:$0xf]
    %v195 = vld [vmem:[#allocation7 + $0x128] sm:$0xf]
    %v196 = vld [vmem:[#allocation7 + $0x12c] sm:$0xf]
    %v197 = vld [vmem:[#allocation7 + $0x130] sm:$0xf]
    %v198 = vld [vmem:[#allocation7 + $0x134] sm:$0xf]
    %v199 = vld [vmem:[#allocation7 + $0x138] sm:$0xf]
    %v200 = vld [vmem:[#allocation7 + $0x13c] sm:$0xf]
    %v201 = vld [vmem:[#allocation7 + $0x140] sm:$0xf]
    %v202 = vld [vmem:[#allocation7 + $0x144] sm:$0xf]
    %v203 = vld [vmem:[#allocation7 + $0x148] sm:$0xf]
    %v204 = vld [vmem:[#allocation7 + $0x14c] sm:$0xf]
    %v205 = vld [vmem:[#allocation7 + $0x150] sm:$0xf]
    %v206 = vld [vmem:[#allocation7 + $0x154] sm:$0xf]
    %v207 = vld [vmem:[#allocation7 + $0x158] sm:$0xf]
    %v208 = vld [vmem:[#allocation7 + $0x15c] sm:$0xf]
    %v209 = vld [vmem:[#allocation7 + $0x160] sm:$0xf]
    %v210 = vld [vmem:[#allocation7 + $0x164] sm:$0xf]
    %v211 = vld [vmem:[#allocation7 + $0x168] sm:$0xf]
    %v212 = vld [vmem:[#allocation7 + $0x16c] sm:$0xf]
    %v213 = vld [vmem:[#allocation7 + $0x170] sm:$0xf]
    %v214 = vld [vmem:[#allocation7 + $0x174] sm:$0xf]
    %v215 = vld [vmem:[#allocation7 + $0x178] sm:$0xf]
    %v216 = vld [vmem:[#allocation7 + $0x17c] sm:$0xf]
    %v217 = vld [vmem:[#allocation7 + $0x180] sm:$0xf]
    %v218 = vld [vmem:[#allocation7 + $0x184] sm:$0xf]
    %v219 = vld [vmem:[#allocation7 + $0x188] sm:$0xf]
    %v220 = vld [vmem:[#allocation7 + $0x18c] sm:$0xf]
    %v221 = vld [vmem:[#allocation7 + $0x190] sm:$0xf]
    %v222 = vld [vmem:[#allocation7 + $0x194] sm:$0xf]
    %v223 = vld [vmem:[#allocation7 + $0x198] sm:$0xf]
    %v224 = vld [vmem:[#allocation7 + $0x19c] sm:$0xf]
    %v225 = vld [vmem:[#allocation7 + $0x1a0] sm:$0xf]
    %v226 = vld [vmem:[#allocation7 + $0x1a4] sm:$0xf]
    %v227 = vld [vmem:[#allocation7 + $0x1a8] sm:$0xf]
    %v228 = vld [vmem:[#allocation7 + $0x1ac] sm:$0xf]
    %v229 = vld [vmem:[#allocation7 + $0x1b0] sm:$0xf]
    %v230 = vld [vmem:[#allocation7 + $0x1b4] sm:$0xf]
    %v231 = vld [vmem:[#allocation7 + $0x1b8] sm:$0xf]
    %v232 = vld [vmem:[#allocation7 + $0x1bc] sm:$0xf]
    %v233 = vld [vmem:[#allocation7 + $0x1c0] sm:$0xf]
    %v234 = vld [vmem:[#allocation7 + $0x1c4] sm:$0xf]
    %v235 = vld [vmem:[#allocation7 + $0x1c8] sm:$0xf]
    %v236 = vld [vmem:[#allocation7 + $0x1cc] sm:$0xf]
    %v237 = vld [vmem:[#allocation7 + $0x1d0] sm:$0xf]
    %v238 = vld [vmem:[#allocation7 + $0x1d4] sm:$0xf]
    %v239 = vld [vmem:[#allocation7 + $0x1d8] sm:$0xf]
    %v240 = vld [vmem:[#allocation7 + $0x1dc] sm:$0xf]
    %v241 = vld [vmem:[#allocation7 + $0x1e0] sm:$0xf]
    %v242 = vld [vmem:[#allocation7 + $0x1e4] sm:$0xf]
    %v243 = vld [vmem:[#allocation7 + $0x1e8] sm:$0xf]
    %v244 = vld [vmem:[#allocation7 + $0x1ec] sm:$0xf]
    %v245 = vld [vmem:[#allocation7 + $0x1f0] sm:$0xf]
    %v246 = vld [vmem:[#allocation7 + $0x1f4] sm:$0xf]
    %v247 = vld [vmem:[#allocation7 + $0x1f8] sm:$0xf]
    %v248 = vld [vmem:[#allocation7 + $0x1fc] sm:$0xf]
    %v249 = vld [vmem:[#allocation8] sm:$0xf]
    %v250 = vld [vmem:[#allocation8 + $0x4] sm:$0xf]
    %v251 = vld [vmem:[#allocation8 + $0x8] sm:$0xf]
    %v252 = vld [vmem:[#allocation8 + $0xc] sm:$0xf]
    %v253 = vld [vmem:[#allocation8 + $0x10] sm:$0xf]
    %v254 = vld [vmem:[#allocation8 + $0x14] sm:$0xf]
    %v255 = vld [vmem:[#allocation8 + $0x18] sm:$0xf]
    %v256 = vld [vmem:[#allocation8 + $0x1c] sm:$0xf]
    %v257 = vld [vmem:[#allocation8 + $0x20] sm:$0xf]
    %v258 = vld [vmem:[#allocation8 + $0x24] sm:$0xf]
    %v259 = vld [vmem:[#allocation8 + $0x28] sm:$0xf]
    %v260 = vld [vmem:[#allocation8 + $0x2c] sm:$0xf]
    %v261 = vld [vmem:[#allocation8 + $0x30] sm:$0xf]
    %v262 = vld [vmem:[#allocation8 + $0x34] sm:$0xf]
    %v263 = vld [vmem:[#allocation8 + $0x38] sm:$0xf]
    %v264 = vld [vmem:[#allocation8 + $0x3c] sm:$0xf]
    %v265 = vld [vmem:[#allocation8 + $0x40] sm:$0xf]
    %v266 = vld [vmem:[#allocation8 + $0x44] sm:$0xf]
    %v267 = vld [vmem:[#allocation8 + $0x48] sm:$0xf]
    %v268 = vld [vmem:[#allocation8 + $0x4c] sm:$0xf]
    %v269 = vld [vmem:[#allocation8 + $0x50] sm:$0xf]
    %v270 = vld [vmem:[#allocation8 + $0x54] sm:$0xf]
    %v271 = vld [vmem:[#allocation8 + $0x58] sm:$0xf]
    %v272 = vld [vmem:[#allocation8 + $0x5c] sm:$0xf]
    %v273 = vld [vmem:[#allocation8 + $0x60] sm:$0xf]
    %v274 = vld [vmem:[#allocation8 + $0x64] sm:$0xf]
    %v275 = vld [vmem:[#allocation8 + $0x68] sm:$0xf]
    %v276 = vld [vmem:[#allocation8 + $0x6c] sm:$0xf]
    %v277 = vld [vmem:[#allocation8 + $0x70] sm:$0xf]
    %v278 = vld [vmem:[#allocation8 + $0x74] sm:$0xf]
    %v279 = vld [vmem:[#allocation8 + $0x78] sm:$0xf]
    %v280 = vld [vmem:[#allocation8 + $0x7c] sm:$0xf]
    %v281 = vld [vmem:[%s4] sm:$0x1]
    %v282 = vld [vmem:[#allocation10] sm:$0xf]
    %v283 = vld [vmem:[#allocation10 + $0x4] sm:$0xf]
    %v284 = vld [vmem:[#allocation10 + $0x8] sm:$0xf]
    %v285 = vld [vmem:[#allocation10 + $0xc] sm:$0xf]
    %v286 = vld [vmem:[#allocation10 + $0x10] sm:$0xf]
    %v287 = vld [vmem:[#allocation10 + $0x14] sm:$0xf]
    %v288 = vld [vmem:[#allocation10 + $0x18] sm:$0xf]
    %v289 = vld [vmem:[#allocation10 + $0x1c] sm:$0xf]
    %v290 = vld [vmem:[#allocation10 + $0x20] sm:$0xf]
    %v291 = vld [vmem:[#allocation10 + $0x24] sm:$0xf]
    %v292 = vld [vmem:[#allocation10 + $0x28] sm:$0xf]
    %v293 = vld [vmem:[#allocation10 + $0x2c] sm:$0xf]
    %v294 = vld [vmem:[#allocation10 + $0x30] sm:$0xf]
    %v295 = vld [vmem:[#allocation10 + $0x34] sm:$0xf]
    %v296 = vld [vmem:[#allocation10 + $0x38] sm:$0xf]
    %v297 = vld [vmem:[#allocation10 + $0x3c] sm:$0xf]
    %v298 = vld [vmem:[%s6] sm:$0x1]
    %300 = vst [vmem:[#allocation1] ss:$9 sm:$0xff] %v113
    %s302 = scalar_lea.vmem [#allocation1], 1
    %303 = vst [vmem:[%s302] ss:$9 sm:$0xff] %v114
    %s305 = scalar_lea.vmem [#allocation1], 2
    %306 = vst [vmem:[%s305] ss:$9 sm:$0xff] %v115
    %s308 = scalar_lea.vmem [#allocation1], 3
    %309 = vst [vmem:[%s308] ss:$9 sm:$0xff] %v116
    %s311 = scalar_lea.vmem [#allocation1], 4
    %312 = vst [vmem:[%s311] ss:$9 sm:$0xff] %v117
    %s314 = scalar_lea.vmem [#allocation1], 5
    %315 = vst [vmem:[%s314] ss:$9 sm:$0xff] %v118
    %s317 = scalar_lea.vmem [#allocation1], 6
    %318 = vst [vmem:[%s317] ss:$9 sm:$0xff] %v119
    %s320 = scalar_lea.vmem [#allocation1], 7
    %321 = vst [vmem:[%s320] ss:$9 sm:$0xff] %v120
    %v322 = vld [vmem:[#allocation1] sm:$0xff]
    %v323 = vld [vmem:[#allocation1 + $0x9] sm:$0xff]
    %v358 = vunpack.c.l.b16 %v249
    %v359 = vunpack.c.l.b16 %v250
    %v360 = vunpack.c.l.b16 %v251
    %v361 = vunpack.c.l.b16 %v252
    %v362 = vunpack.c.l.b16 %v253
    %v363 = vunpack.c.l.b16 %v254
    %v364 = vunpack.c.l.b16 %v255
    %v365 = vunpack.c.l.b16 %v256
    %v366 = vunpack.c.l.b16 %v257
    %v367 = vunpack.c.l.b16 %v258
    %v368 = vunpack.c.l.b16 %v259
    %v369 = vunpack.c.l.b16 %v260
    %v370 = vunpack.c.l.b16 %v261
    %v371 = vunpack.c.l.b16 %v262
    %v372 = vunpack.c.l.b16 %v263
    %v373 = vunpack.c.l.b16 %v264
    %v374 = vunpack.c.l.b16 %v265
    %v375 = vunpack.c.l.b16 %v266
    %v376 = vunpack.c.l.b16 %v267
    %v377 = vunpack.c.l.b16 %v268
    %v378 = vunpack.c.l.b16 %v269
    %v379 = vunpack.c.l.b16 %v270
    %v380 = vunpack.c.l.b16 %v271
    %v381 = vunpack.c.l.b16 %v272
    %v382 = vunpack.c.l.b16 %v273
    %v383 = vunpack.c.l.b16 %v274
    %v384 = vunpack.c.l.b16 %v275
    %v385 = vunpack.c.l.b16 %v276
    %v386 = vunpack.c.l.b16 %v277
    %v387 = vunpack.c.l.b16 %v278
    %v388 = vunpack.c.l.b16 %v279
    %v389 = vunpack.c.l.b16 %v280
    %v390 = vpack.c.b16 %v359, %v358
    %v391 = vpack.c.b16 %v361, %v360
    %v392 = vpack.c.b16 %v363, %v362
    %v393 = vpack.c.b16 %v365, %v364
    %v394 = vpack.c.b16 %v367, %v366
    %v395 = vpack.c.b16 %v369, %v368
    %v396 = vpack.c.b16 %v371, %v370
    %v397 = vpack.c.b16 %v373, %v372
    %v398 = vpack.c.b16 %v375, %v374
    %v399 = vpack.c.b16 %v377, %v376
    %v400 = vpack.c.b16 %v379, %v378
    %v401 = vpack.c.b16 %v381, %v380
    %v402 = vpack.c.b16 %v383, %v382
    %v403 = vpack.c.b16 %v385, %v384
    %v404 = vpack.c.b16 %v387, %v386
    %v405 = vpack.c.b16 %v389, %v388
    %422 = vmatpush.bf16.msra.mxu0 %v397
    %423 = vmatpush.bf16.msra.mxu0 %v396
    %424 = vmatpush.bf16.msra.mxu0 %v395
    %425 = vmatpush.bf16.msra.mxu0 %v394
    %426 = vmatpush.bf16.msra.mxu0 %v393
    %427 = vmatpush.bf16.msra.mxu0 %v392
    %428 = vmatpush.bf16.msra.mxu0 %v391
    %429 = vmatpush.bf16.msra.mxu0 %v390
    %430 = vmatmul.bf16.gmra.mxu0 %v322
    %v431 = vpop.f32.mrf.mxu0
    %v432 = vadd.f32 0.0, %v431
    %v433 = vpop.f32.mrf.mxu0
    %v434 = vadd.f32 0.0, %v433
    %435 = vdwg.mxu0
    %436 = vmatpush.bf16.msra.mxu0 %v405
    %437 = vmatpush.bf16.msra.mxu0 %v404
    %438 = vmatpush.bf16.msra.mxu0 %v403
    %439 = vmatpush.bf16.msra.mxu0 %v402
    %440 = vmatpush.bf16.msra.mxu0 %v401
    %441 = vmatpush.bf16.msra.mxu0 %v400
    %442 = vmatpush.bf16.msra.mxu0 %v399
    %443 = vmatpush.bf16.msra.mxu0 %v398
    %444 = vmatmul.bf16.gmra.mxu0 %v323
    %v445 = vpop.f32.mrf.mxu0
    %v446 = vadd.f32 %v432, %v445
    %v447 = vpop.f32.mrf.mxu0
    %v448 = vadd.f32 %v434, %v447
    %449 = vdwg.mxu0
    %451 = vst [vmem:[#allocation1] ss:$9 sm:$0xff] %v105
    %s453 = scalar_lea.vmem [#allocation1], 1
    %454 = vst [vmem:[%s453] ss:$9 sm:$0xff] %v106
    %s456 = scalar_lea.vmem [#allocation1], 2
    %457 = vst [vmem:[%s456] ss:$9 sm:$0xff] %v107
    %s459 = scalar_lea.vmem [#allocation1], 3
    %460 = vst [vmem:[%s459] ss:$9 sm:$0xff] %v108
    %s462 = scalar_lea.vmem [#allocation1], 4
    %463 = vst [vmem:[%s462] ss:$9 sm:$0xff] %v109
    %s465 = scalar_lea.vmem [#allocation1], 5
    %466 = vst [vmem:[%s465] ss:$9 sm:$0xff] %v110
    %s468 = scalar_lea.vmem [#allocation1], 6
    %469 = vst [vmem:[%s468] ss:$9 sm:$0xff] %v111
    %s471 = scalar_lea.vmem [#allocation1], 7
    %472 = vst [vmem:[%s471] ss:$9 sm:$0xff] %v112
    %v473 = vld [vmem:[#allocation1] sm:$0xff]
    %v474 = vld [vmem:[#allocation1 + $0x9] sm:$0xff]
    %v475 = vld [vmem:[#allocation1 + $0x12] sm:$0xff]
    %v476 = vld [vmem:[#allocation1 + $0x1b] sm:$0xff]
    %v477 = vld [vmem:[#allocation1 + $0x24] sm:$0xff]
    %v478 = vld [vmem:[#allocation1 + $0x2d] sm:$0xff]
    %v479 = vld [vmem:[#allocation1 + $0x36] sm:$0xff]
    %v480 = vld [vmem:[#allocation1 + $0x3f] sm:$0xff]
    %v617 = vunpack.c.l.b16 %v121
    %v618 = vunpack.c.l.b16 %v122
    %v619 = vunpack.c.l.b16 %v123
    %v620 = vunpack.c.l.b16 %v124
    %v621 = vunpack.c.l.b16 %v125
    %v622 = vunpack.c.l.b16 %v126
    %v623 = vunpack.c.l.b16 %v127
    %v624 = vunpack.c.l.b16 %v128
    %v625 = vunpack.c.l.b16 %v129
    %v626 = vunpack.c.l.b16 %v130
    %v627 = vunpack.c.l.b16 %v131
    %v628 = vunpack.c.l.b16 %v132
    %v629 = vunpack.c.l.b16 %v133
    %v630 = vunpack.c.l.b16 %v134
    %v631 = vunpack.c.l.b16 %v135
    %v632 = vunpack.c.l.b16 %v136
    %v633 = vunpack.c.l.b16 %v137
    %v634 = vunpack.c.l.b16 %v138
    %v635 = vunpack.c.l.b16 %v139
    %v636 = vunpack.c.l.b16 %v140
    %v637 = vunpack.c.l.b16 %v141
    %v638 = vunpack.c.l.b16 %v142
    %v639 = vunpack.c.l.b16 %v143
    %v640 = vunpack.c.l.b16 %v144
    %v641 = vunpack.c.l.b16 %v145
    %v642 = vunpack.c.l.b16 %v146
    %v643 = vunpack.c.l.b16 %v147
    %v644 = vunpack.c.l.b16 %v148
    %v645 = vunpack.c.l.b16 %v149
    %v646 = vunpack.c.l.b16 %v150
    %v647 = vunpack.c.l.b16 %v151
    %v648 = vunpack.c.l.b16 %v152
    %v649 = vunpack.c.l.b16 %v153
    %v650 = vunpack.c.l.b16 %v154
    %v651 = vunpack.c.l.b16 %v155
    %v652 = vunpack.c.l.b16 %v156
    %v653 = vunpack.c.l.b16 %v157
    %v654 = vunpack.c.l.b16 %v158
    %v655 = vunpack.c.l.b16 %v159
    %v656 = vunpack.c.l.b16 %v160
    %v657 = vunpack.c.l.b16 %v161
    %v658 = vunpack.c.l.b16 %v162
    %v659 = vunpack.c.l.b16 %v163
    %v660 = vunpack.c.l.b16 %v164
    %v661 = vunpack.c.l.b16 %v165
    %v662 = vunpack.c.l.b16 %v166
    %v663 = vunpack.c.l.b16 %v167
    %v664 = vunpack.c.l.b16 %v168
    %v665 = vunpack.c.l.b16 %v169
    %v666 = vunpack.c.l.b16 %v170
    %v667 = vunpack.c.l.b16 %v171
    %v668 = vunpack.c.l.b16 %v172
    %v669 = vunpack.c.l.b16 %v173
    %v670 = vunpack.c.l.b16 %v174
    %v671 = vunpack.c.l.b16 %v175
    %v672 = vunpack.c.l.b16 %v176
    %v673 = vunpack.c.l.b16 %v177
    %v674 = vunpack.c.l.b16 %v178
    %v675 = vunpack.c.l.b16 %v179
    %v676 = vunpack.c.l.b16 %v180
    %v677 = vunpack.c.l.b16 %v181
    %v678 = vunpack.c.l.b16 %v182
    %v679 = vunpack.c.l.b16 %v183
    %v680 = vunpack.c.l.b16 %v184
    %v681 = vunpack.c.l.b16 %v185
    %v682 = vunpack.c.l.b16 %v186
    %v683 = vunpack.c.l.b16 %v187
    %v684 = vunpack.c.l.b16 %v188
    %v685 = vunpack.c.l.b16 %v189
    %v686 = vunpack.c.l.b16 %v190
    %v687 = vunpack.c.l.b16 %v191
    %v688 = vunpack.c.l.b16 %v192
    %v689 = vunpack.c.l.b16 %v193
    %v690 = vunpack.c.l.b16 %v194
    %v691 = vunpack.c.l.b16 %v195
    %v692 = vunpack.c.l.b16 %v196
    %v693 = vunpack.c.l.b16 %v197
    %v694 = vunpack.c.l.b16 %v198
    %v695 = vunpack.c.l.b16 %v199
    %v696 = vunpack.c.l.b16 %v200
    %v697 = vunpack.c.l.b16 %v201
    %v698 = vunpack.c.l.b16 %v202
    %v699 = vunpack.c.l.b16 %v203
    %v700 = vunpack.c.l.b16 %v204
    %v701 = vunpack.c.l.b16 %v205
    %v702 = vunpack.c.l.b16 %v206
    %v703 = vunpack.c.l.b16 %v207
    %v704 = vunpack.c.l.b16 %v208
    %v705 = vunpack.c.l.b16 %v209
    %v706 = vunpack.c.l.b16 %v210
    %v707 = vunpack.c.l.b16 %v211
    %v708 = vunpack.c.l.b16 %v212
    %v709 = vunpack.c.l.b16 %v213
    %v710 = vunpack.c.l.b16 %v214
    %v711 = vunpack.c.l.b16 %v215
    %v712 = vunpack.c.l.b16 %v216
    %v713 = vunpack.c.l.b16 %v217
    %v714 = vunpack.c.l.b16 %v218
    %v715 = vunpack.c.l.b16 %v219
    %v716 = vunpack.c.l.b16 %v220
    %v717 = vunpack.c.l.b16 %v221
    %v718 = vunpack.c.l.b16 %v222
    %v719 = vunpack.c.l.b16 %v223
    %v720 = vunpack.c.l.b16 %v224
    %v721 = vunpack.c.l.b16 %v225
    %v722 = vunpack.c.l.b16 %v226
    %v723 = vunpack.c.l.b16 %v227
    %v724 = vunpack.c.l.b16 %v228
    %v725 = vunpack.c.l.b16 %v229
    %v726 = vunpack.c.l.b16 %v230
    %v727 = vunpack.c.l.b16 %v231
    %v728 = vunpack.c.l.b16 %v232
    %v729 = vunpack.c.l.b16 %v233
    %v730 = vunpack.c.l.b16 %v234
    %v731 = vunpack.c.l.b16 %v235
    %v732 = vunpack.c.l.b16 %v236
    %v733 = vunpack.c.l.b16 %v237
    %v734 = vunpack.c.l.b16 %v238
    %v735 = vunpack.c.l.b16 %v239
    %v736 = vunpack.c.l.b16 %v240
    %v737 = vunpack.c.l.b16 %v241
    %v738 = vunpack.c.l.b16 %v242
    %v739 = vunpack.c.l.b16 %v243
    %v740 = vunpack.c.l.b16 %v244
    %v741 = vunpack.c.l.b16 %v245
    %v742 = vunpack.c.l.b16 %v246
    %v743 = vunpack.c.l.b16 %v247
    %v744 = vunpack.c.l.b16 %v248
    %v745 = vpack.c.b16 %v618, %v617
    %v746 = vpack.c.b16 %v620, %v619
    %v747 = vpack.c.b16 %v622, %v621
    %v748 = vpack.c.b16 %v624, %v623
    %v749 = vpack.c.b16 %v626, %v625
    %v750 = vpack.c.b16 %v628, %v627
    %v751 = vpack.c.b16 %v630, %v629
    %v752 = vpack.c.b16 %v632, %v631
    %v753 = vpack.c.b16 %v634, %v633
    %v754 = vpack.c.b16 %v636, %v635
    %v755 = vpack.c.b16 %v638, %v637
    %v756 = vpack.c.b16 %v640, %v639
    %v757 = vpack.c.b16 %v642, %v641
    %v758 = vpack.c.b16 %v644, %v643
    %v759 = vpack.c.b16 %v646, %v645
    %v760 = vpack.c.b16 %v648, %v647
    %v761 = vpack.c.b16 %v650, %v649
    %v762 = vpack.c.b16 %v652, %v651
    %v763 = vpack.c.b16 %v654, %v653
    %v764 = vpack.c.b16 %v656, %v655
    %v765 = vpack.c.b16 %v658, %v657
    %v766 = vpack.c.b16 %v660, %v659
    %v767 = vpack.c.b16 %v662, %v661
    %v768 = vpack.c.b16 %v664, %v663
    %v769 = vpack.c.b16 %v666, %v665
    %v770 = vpack.c.b16 %v668, %v667
    %v771 = vpack.c.b16 %v670, %v669
    %v772 = vpack.c.b16 %v672, %v671
    %v773 = vpack.c.b16 %v674, %v673
    %v774 = vpack.c.b16 %v676, %v675
    %v775 = vpack.c.b16 %v678, %v677
    %v776 = vpack.c.b16 %v680, %v679
    %v777 = vpack.c.b16 %v682, %v681
    %v778 = vpack.c.b16 %v684, %v683
    %v779 = vpack.c.b16 %v686, %v685
    %v780 = vpack.c.b16 %v688, %v687
    %v781 = vpack.c.b16 %v690, %v689
    %v782 = vpack.c.b16 %v692, %v691
    %v783 = vpack.c.b16 %v694, %v693
    %v784 = vpack.c.b16 %v696, %v695
    %v785 = vpack.c.b16 %v698, %v697
    %v786 = vpack.c.b16 %v700, %v699
    %v787 = vpack.c.b16 %v702, %v701
    %v788 = vpack.c.b16 %v704, %v703
    %v789 = vpack.c.b16 %v706, %v705
    %v790 = vpack.c.b16 %v708, %v707
    %v791 = vpack.c.b16 %v710, %v709
    %v792 = vpack.c.b16 %v712, %v711
    %v793 = vpack.c.b16 %v714, %v713
    %v794 = vpack.c.b16 %v716, %v715
    %v795 = vpack.c.b16 %v718, %v717
    %v796 = vpack.c.b16 %v720, %v719
    %v797 = vpack.c.b16 %v722, %v721
    %v798 = vpack.c.b16 %v724, %v723
    %v799 = vpack.c.b16 %v726, %v725
    %v800 = vpack.c.b16 %v728, %v727
    %v801 = vpack.c.b16 %v730, %v729
    %v802 = vpack.c.b16 %v732, %v731
    %v803 = vpack.c.b16 %v734, %v733
    %v804 = vpack.c.b16 %v736, %v735
    %v805 = vpack.c.b16 %v738, %v737
    %v806 = vpack.c.b16 %v740, %v739
    %v807 = vpack.c.b16 %v742, %v741
    %v808 = vpack.c.b16 %v744, %v743
    %873 = vmatpush.bf16.msra.mxu0 %v752
    %874 = vmatpush.bf16.msra.mxu0 %v751
    %875 = vmatpush.bf16.msra.mxu0 %v750
    %876 = vmatpush.bf16.msra.mxu0 %v749
    %877 = vmatpush.bf16.msra.mxu0 %v748
    %878 = vmatpush.bf16.msra.mxu0 %v747
    %879 = vmatpush.bf16.msra.mxu0 %v746
    %880 = vmatpush.bf16.msra.mxu0 %v745
    %881 = vmatmul.bf16.gmra.mxu0 %v473
    %v882 = vpop.f32.mrf.mxu0
    %v883 = vadd.f32 %v446, %v882
    %v884 = vpop.f32.mrf.mxu0
    %v885 = vadd.f32 %v448, %v884
    %886 = vdwg.mxu0
    %887 = vmatpush.bf16.msra.mxu0 %v760
    %888 = vmatpush.bf16.msra.mxu0 %v759
    %889 = vmatpush.bf16.msra.mxu0 %v758
    %890 = vmatpush.bf16.msra.mxu0 %v757
    %891 = vmatpush.bf16.msra.mxu0 %v756
    %892 = vmatpush.bf16.msra.mxu0 %v755
    %893 = vmatpush.bf16.msra.mxu0 %v754
    %894 = vmatpush.bf16.msra.mxu0 %v753
    %895 = vmatmul.bf16.gmra.mxu0 %v474
    %v896 = vpop.f32.mrf.mxu0
    %v897 = vadd.f32 %v883, %v896
    %v898 = vpop.f32.mrf.mxu0
    %v899 = vadd.f32 %v885, %v898
    %900 = vdwg.mxu0
    %901 = vmatpush.bf16.msra.mxu0 %v768
    %902 = vmatpush.bf16.msra.mxu0 %v767
    %903 = vmatpush.bf16.msra.mxu0 %v766
    %904 = vmatpush.bf16.msra.mxu0 %v765
    %905 = vmatpush.bf16.msra.mxu0 %v764
    %906 = vmatpush.bf16.msra.mxu0 %v763
    %907 = vmatpush.bf16.msra.mxu0 %v762
    %908 = vmatpush.bf16.msra.mxu0 %v761
    %909 = vmatmul.bf16.gmra.mxu0 %v475
    %v910 = vpop.f32.mrf.mxu0
    %v911 = vadd.f32 %v897, %v910
    %v912 = vpop.f32.mrf.mxu0
    %v913 = vadd.f32 %v899, %v912
    %914 = vdwg.mxu0
    %915 = vmatpush.bf16.msra.mxu0 %v776
    %916 = vmatpush.bf16.msra.mxu0 %v775
    %917 = vmatpush.bf16.msra.mxu0 %v774
    %918 = vmatpush.bf16.msra.mxu0 %v773
    %919 = vmatpush.bf16.msra.mxu0 %v772
    %920 = vmatpush.bf16.msra.mxu0 %v771
    %921 = vmatpush.bf16.msra.mxu0 %v770
    %922 = vmatpush.bf16.msra.mxu0 %v769
    %923 = vmatmul.bf16.gmra.mxu0 %v476
    %v924 = vpop.f32.mrf.mxu0
    %v925 = vadd.f32 %v911, %v924
    %v926 = vpop.f32.mrf.mxu0
    %v927 = vadd.f32 %v913, %v926
    %928 = vdwg.mxu0
    %929 = vmatpush.bf16.msra.mxu0 %v784
    %930 = vmatpush.bf16.msra.mxu0 %v783
    %931 = vmatpush.bf16.msra.mxu0 %v782
    %932 = vmatpush.bf16.msra.mxu0 %v781
    %933 = vmatpush.bf16.msra.mxu0 %v780
    %934 = vmatpush.bf16.msra.mxu0 %v779
    %935 = vmatpush.bf16.msra.mxu0 %v778
    %936 = vmatpush.bf16.msra.mxu0 %v777
    %937 = vmatmul.bf16.gmra.mxu0 %v477
    %v938 = vpop.f32.mrf.mxu0
    %v939 = vadd.f32 %v925, %v938
    %v940 = vpop.f32.mrf.mxu0
    %v941 = vadd.f32 %v927, %v940
    %942 = vdwg.mxu0
    %943 = vmatpush.bf16.msra.mxu0 %v792
    %944 = vmatpush.bf16.msra.mxu0 %v791
    %945 = vmatpush.bf16.msra.mxu0 %v790
    %946 = vmatpush.bf16.msra.mxu0 %v789
    %947 = vmatpush.bf16.msra.mxu0 %v788
    %948 = vmatpush.bf16.msra.mxu0 %v787
    %949 = vmatpush.bf16.msra.mxu0 %v786
    %950 = vmatpush.bf16.msra.mxu0 %v785
    %951 = vmatmul.bf16.gmra.mxu0 %v478
    %v952 = vpop.f32.mrf.mxu0
    %v953 = vadd.f32 %v939, %v952
    %v954 = vpop.f32.mrf.mxu0
    %v955 = vadd.f32 %v941, %v954
    %956 = vdwg.mxu0
    %957 = vmatpush.bf16.msra.mxu0 %v800
    %958 = vmatpush.bf16.msra.mxu0 %v799
    %959 = vmatpush.bf16.msra.mxu0 %v798
    %960 = vmatpush.bf16.msra.mxu0 %v797
    %961 = vmatpush.bf16.msra.mxu0 %v796
    %962 = vmatpush.bf16.msra.mxu0 %v795
    %963 = vmatpush.bf16.msra.mxu0 %v794
    %964 = vmatpush.bf16.msra.mxu0 %v793
    %965 = vmatmul.bf16.gmra.mxu0 %v479
    %v966 = vpop.f32.mrf.mxu0
    %v967 = vadd.f32 %v953, %v966
    %v968 = vpop.f32.mrf.mxu0
    %v969 = vadd.f32 %v955, %v968
    %970 = vdwg.mxu0
    %971 = vmatpush.bf16.msra.mxu0 %v808
    %972 = vmatpush.bf16.msra.mxu0 %v807
    %973 = vmatpush.bf16.msra.mxu0 %v806
    %974 = vmatpush.bf16.msra.mxu0 %v805
    %975 = vmatpush.bf16.msra.mxu0 %v804
    %976 = vmatpush.bf16.msra.mxu0 %v803
    %977 = vmatpush.bf16.msra.mxu0 %v802
    %978 = vmatpush.bf16.msra.mxu0 %v801
    %979 = vmatmul.bf16.gmra.mxu0 %v480
    %v980 = vpop.f32.mrf.mxu0
    %v981 = vadd.f32 %v967, %v980
    %v982 = vpop.f32.mrf.mxu0
    %v983 = vadd.f32 %v969, %v982
    %984 = vdwg.mxu0
    %v986 = vperm.slane %v281, 0
    %v988 = vadd.f32 %v981, %v986
    %v989 = vadd.f32 %v983, %v986
    %v990 = vmax.f32 %v988, 0.0
    %v991 = vmax.f32 %v989, 0.0
    %v992 = vpack.c.bf16 %v991, %v990
    %v994 = vperm.slane %v298, 0
    %v1012 = vunpack.c.l.b16 %v282
    %v1013 = vunpack.c.l.b16 %v283
    %v1014 = vunpack.c.l.b16 %v284
    %v1015 = vunpack.c.l.b16 %v285
    %v1016 = vunpack.c.l.b16 %v286
    %v1017 = vunpack.c.l.b16 %v287
    %v1018 = vunpack.c.l.b16 %v288
    %v1019 = vunpack.c.l.b16 %v289
    %v1020 = vunpack.c.l.b16 %v290
    %v1021 = vunpack.c.l.b16 %v291
    %v1022 = vunpack.c.l.b16 %v292
    %v1023 = vunpack.c.l.b16 %v293
    %v1024 = vunpack.c.l.b16 %v294
    %v1025 = vunpack.c.l.b16 %v295
    %v1026 = vunpack.c.l.b16 %v296
    %v1027 = vunpack.c.l.b16 %v297
    %v1028 = vpack.c.b16 %v1013, %v1012
    %v1029 = vpack.c.b16 %v1015, %v1014
    %v1030 = vpack.c.b16 %v1017, %v1016
    %v1031 = vpack.c.b16 %v1019, %v1018
    %v1032 = vpack.c.b16 %v1021, %v1020
    %v1033 = vpack.c.b16 %v1023, %v1022
    %v1034 = vpack.c.b16 %v1025, %v1024
    %v1035 = vpack.c.b16 %v1027, %v1026
    %1044 = vmatpush.bf16.msra.mxu0 %v1035
    %1045 = vmatpush.bf16.msra.mxu0 %v1034
    %1046 = vmatpush.bf16.msra.mxu0 %v1033
    %1047 = vmatpush.bf16.msra.mxu0 %v1032
    %1048 = vmatpush.bf16.msra.mxu0 %v1031
    %1049 = vmatpush.bf16.msra.mxu0 %v1030
    %1050 = vmatpush.bf16.msra.mxu0 %v1029
    %1051 = vmatpush.bf16.msra.mxu0 %v1028
    %1052 = vmatmul.bf16.gmra.mxu0 %v992
    %v1053 = vpop.f32.mrf.mxu0
    %v1054 = vadd.f32 %v994, %v1053
    %v1055 = vpop.f32.mrf.mxu0
    %v1056 = vadd.f32 %v994, %v1055
    %1057 = vdwg.mxu0
    %v1058 = vpack.c.bf16 %v1054, %v1054
    %v1059 = vpack.c.bf16 %v1056, %v1056
    %v1062 = vrot.slane %v1058, 3
    %v1063 = vrot.slane %v1059, 3
    %vm1064 = vcmask 1040384
    %v1067 = vsel %vm1064, %v1058, %v1062
    %vm1068 = vcmask 1041409
    %v1069 = vsel %vm1068, %v1058, %v1062
    %v1071 = vrot.slane %v1069, 1
    %vm1072 = vcmask 1042434
    %v1073 = vsel %vm1072, %v1058, %v1062
    %v1075 = vrot.slane %v1073, 2
    %vm1076 = vcmask 1043459
    %v1077 = vsel %vm1076, %v1058, %v1062
    %v1079 = vrot.slane %v1077, 3
    %v1082 = vsel %vm1064, %v1059, %v1063
    %v1083 = vsel %vm1068, %v1059, %v1063
    %v1085 = vrot.slane %v1083, 1
    %v1086 = vsel %vm1072, %v1059, %v1063
    %v1088 = vrot.slane %v1086, 2
    %v1089 = vsel %vm1076, %v1059, %v1063
    %v1091 = vrot.slane %v1089, 3
    %1100 = vst [vmem:[#allocation11] sm:$0x1] %v1067
    %1101 = vst [vmem:[#allocation11 + $0x1] sm:$0x1] %v1071
    %1102 = vst [vmem:[#allocation11 + $0x2] sm:$0x1] %v1075
    %1103 = vst [vmem:[#allocation11 + $0x3] sm:$0x1] %v1079
    %1104 = vst [vmem:[#allocation11 + $0x4] sm:$0x1] %v1082
    %1105 = vst [vmem:[#allocation11 + $0x5] sm:$0x1] %v1085
    %1106 = vst [vmem:[#allocation11 + $0x6] sm:$0x1] %v1088
    %1107 = vst [vmem:[#allocation11 + $0x7] sm:$0x1] %v1091
    // Predicated region
    $region50: #{tpu_custom_call.1} parent=1 // pred_check
      _
    $region51: #{tpu_custom_call.1} parent=1 // pred_check_branch
      %1109 = sbr.rel (0) target = $region53
    $region52: #{tpu_custom_call.1} parent=1 // pred_region
      %1111 = vsyncadd [#allocation4], 112
      %s1112 = sshll.u32 [#allocation11], 4
      %s1113 = int_to_ptr.vmem [resolvable:$true] %s1112
      %s1114 = sshll.u32 %s7, 4
      %s1115 = int_to_ptr.hbm [resolvable:$true] %s1114
      %1120 = dma.vmem_to_hbm [thread:$0]  %s1113, 16, %s1115, [#allocation4], 16, 16, 1
    $region53: #{tpu_custom_call.1} parent=1 // pred_fallthru
      _
    // Predicated region
    $region54: #{tpu_custom_call.1} parent=1 // pred_check
      _
    $region55: #{tpu_custom_call.1} parent=1 // pred_check_branch
      %1122 = sbr.rel (0) target = $region57
    $region56: #{tpu_custom_call.1} parent=1 // pred_region
      %1124 = dma.done [#allocation4], 128
    $region57: #{tpu_custom_call.1} parent=1 // pred_fallthru
      _
    %1125 = vsyncpa [#allocation3], 1
    %1126 = vsyncpa [#allocation6], 1
    %1127 = vsyncpa [#allocation9], 1
    %1128 = vsyncpa [#allocation4], 1

</llo_original>
